<compile_context>
chip_gen: v5e
topology: v5e:2x2
jax: 0.10.0
libtpu: 0.0.40
codegen_flags: <defaults>
</compile_context>

<pallas_src>
import functools

import numpy as np
import jax
import jax.numpy as jnp
from jax import lax
from jax.experimental import pallas as pl
from jax.experimental.pallas import tpu as pltpu


def _round_up(n, m):
    return ((n + m - 1) // m) * m


def fm_kernel(idx_ref, embT_ref, c_ref, out_ref, *, field_sizes_padded):
    """One batch tile of the FM forward pass.

    idx_ref : (F, Bt)      int32  per-field LOCAL indices (batch on lanes)
    embT_ref: (K, R_pad)   f32/bf16  transposed, field-concatenated embeddings
    c_ref   : (1, R_pad)   f32    fused per-row term  w[r] - 0.5*||E[r]||^2
    out_ref : (1, Bt)      f32    sigmoid(logit), lane-dense
    """
    idx = idx_ref[...]                       # (F, Bt)
    bt = idx.shape[1]

    # Per-field one-hot blocks over that field's own (8-aligned) row range
    # only; ranges are disjoint so a concat (all offsets 8-aligned -> native
    # sublane tiling, no relayout) gives the full multi-hot matrix directly.
    blocks = []
    for i, sz in enumerate(field_sizes_padded):     # F is tiny and static
        iota_i = lax.broadcasted_iota(jnp.int32, (sz, bt), 0)
        blocks.append((idx[i:i + 1, :] == iota_i).astype(jnp.float32))
    m = jnp.concatenate(blocks, axis=0)             # (R_pad, Bt) 0/1 f32

    embT = embT_ref[...]                            # (K, R_pad)
    # MXU matmul in the table dtype (bf16 on v6e/v7x doubles MXU rate and
    # halves resident VMEM; m is exactly representable), f32 accumulation.
    sums = jnp.dot(embT, m.astype(embT.dtype),
                   preferred_element_type=jnp.float32)      # (K, Bt)
    # Fused linear - 0.5*sum-of-squares term: tiny full-precision f32 matmul.
    fused = jnp.dot(c_ref[...], m,
                    preferred_element_type=jnp.float32)     # (1, Bt)

    sum_squared = jnp.sum(sums * sums, axis=0, keepdims=True)  # (1, Bt)
    logit = fused + 0.5 * sum_squared
    out_ref[...] = jax.nn.sigmoid(logit)            # lane-dense full store


def build_fm_params(emb_tables, weight_tables, *, table_dtype=jnp.float32,
                    sublane=8):
    """One-time preprocessing (hoisted out of the per-call path).

    Returns (embT, c, field_sizes_padded):
      embT: (K, R_pad) table_dtype, per-field blocks at 8-aligned offsets
      c   : (1, R_pad) f32, c[r] = w[r] - 0.5*||E[r]||^2 (zeros in padding)
    """
    F = len(emb_tables)
    K = int(emb_tables[0].shape[1])
    sizes = [int(t.shape[0]) for t in emb_tables]
    sizes_pad = tuple(_round_up(s, sublane) for s in sizes)
    R_pad = int(sum(sizes_pad))

    embT = jnp.zeros((K, R_pad), jnp.float32)
    c = jnp.zeros((1, R_pad), jnp.float32)
    off = 0
    for i in range(F):
        # Quantize embeddings to the table dtype first so the fused c term is
        # consistent with what the MXU matmul will see (no-op for f32).
        e_q = emb_tables[i].astype(table_dtype).astype(jnp.float32)  # (n_i, K)
        w = weight_tables[i].astype(jnp.float32)                     # (n_i, 1)
        embT = embT.at[:, off:off + sizes[i]].set(e_q.T)
        c = c.at[0, off:off + sizes[i]].set(
            w[:, 0] - 0.5 * jnp.sum(e_q * e_q, axis=1))
        off += sizes_pad[i]

    return embT.astype(table_dtype), c, sizes_pad


def factorization_machine(x, embT, c, field_sizes_padded, *, b_tile=512):
    """x: (B, F) integer field labels.  Returns (B,) f32 sigmoid outputs."""
    B, F = int(x.shape[0]), int(x.shape[1])
    K, R_pad = int(embT.shape[0]), int(embT.shape[1])
    assert R_pad == sum(field_sizes_padded)

    # Large tiles amortize the ~0.35us/step pipeline overhead; tiny batches
    # collapse to a single grid step (latency path).  For v7x serving, pick
    # b_tile so the grid length is >= 2 and the "parallel" axis spans both TCs.
    bt = min(int(b_tile), _round_up(max(B, 1), 128))
    B_pad = _round_up(B, bt)

    # Batch on lanes; pad batch with index 0 (valid rows, outputs discarded).
    idx_t = jnp.zeros((F, B_pad), jnp.int32).at[:, :B].set(x.astype(jnp.int32).T)

    kernel = functools.partial(fm_kernel, field_sizes_padded=field_sizes_padded)
    out = pl.pallas_call(
        kernel,
        out_shape=jax.ShapeDtypeStruct((1, B_pad), jnp.float32),
        grid=(B_pad // bt,),
        in_specs=[
            pl.BlockSpec((F, bt), lambda i: (0, i)),        # indices: batch-tiled
            pl.BlockSpec((K, R_pad), lambda i: (0, 0)),     # embeddings: resident
            pl.BlockSpec((1, R_pad), lambda i: (0, 0)),     # fused c row: resident
        ],
        out_specs=pl.BlockSpec((1, bt), lambda i: (0, i)),
        compiler_params=pltpu.CompilerParams(
            dimension_semantics=("parallel",),
            # Above v5e's 16 MiB scoped default, within v7x's 64 MiB physical.
            vmem_limit_bytes=32 * 1024 * 1024,
        ),
    )(idx_t, embT, c)
    return out[0, :B]


def factorization_machine_ref(x, emb_tables, weight_tables):
    """Pure-JAX reference mirroring the PyTorch forward exactly."""
    sums = 0.0
    squared = 0.0
    linear = 0.0
    for i in range(x.shape[1]):
        e = emb_tables[i][x[:, i]]          # (B, K)
        w = weight_tables[i][x[:, i]]       # (B, 1)
        sums = sums + e
        squared = squared + e * e
        linear = linear + w
    sum_squared = jnp.sum(sums * sums, axis=1)
    squared_sum = jnp.sum(squared, axis=1)
    output = linear[:, 0] + 0.5 * (sum_squared - squared_sum)
    return jax.nn.sigmoid(output)


if __name__ == "__main__":
    # Synthetic FM configuration (stands in for the ml-1m field dims).
    features = [7, 11, 5, 13]      # per-field cardinalities
    embedding_dim = 10             # k, as in the module

    key = jax.random.PRNGKey(0)
    keys = jax.random.split(key, 2 * len(features) + 2)

    # nn.Embedding default init ~ N(0, 1); deterministic via PRNGKey(0).
    emb_tables = [
        jax.random.normal(keys[i], (features[i], embedding_dim), jnp.float32)
        for i in range(len(features))
    ]
    weight_tables = [
        jax.random.normal(keys[len(features) + i], (features[i], 1), jnp.float32)
        for i in range(len(features))
    ]

    def make_x(k, batch):
        xkeys = jax.random.split(k, len(features))
        return jnp.stack(
            [jax.random.randint(xkeys[i], (batch,), 0, features[i], jnp.int32)
             for i in range(len(features))], axis=1)          # (B, F)

    # ---- f32 table path, tiny batch (single grid step) ----
    embT32, c32, sizes_pad = build_fm_params(
        emb_tables, weight_tables, table_dtype=jnp.float32)
    x_small = make_x(keys[-2], 8)
    out_small = jax.block_until_ready(
        factorization_machine(x_small, embT32, c32, sizes_pad))
    ref_small = factorization_machine_ref(x_small, emb_tables, weight_tables)
    assert out_small.shape == (8,), out_small.shape
    np.testing.assert_allclose(np.asarray(out_small), np.asarray(ref_small),
                               rtol=1e-5, atol=1e-5)

    # ---- f32 table path, larger batch (multi-step grid + batch padding) ----
    x_big = make_x(keys[-1], 1056)
    out_big = jax.block_until_ready(
        factorization_machine(x_big, embT32, c32, sizes_pad, b_tile=512))
    ref_big = factorization_machine_ref(x_big, emb_tables, weight_tables)
    np.testing.assert_allclose(np.asarray(out_big), np.asarray(ref_big),
                               rtol=1e-5, atol=1e-5)

    # ---- bf16 embedding-table path (v6e/v7x MXU-native), f32 c row ----
    embT16, c16, sizes_pad16 = build_fm_params(
        emb_tables, weight_tables, table_dtype=jnp.bfloat16)
    out_bf16 = jax.block_until_ready(
        factorization_machine(x_small, embT16, c16, sizes_pad16))
    emb_q = [t.astype(jnp.bfloat16).astype(jnp.float32) for t in emb_tables]
    ref_bf16 = factorization_machine_ref(x_small, emb_q, weight_tables)
    np.testing.assert_allclose(np.asarray(out_bf16), np.asarray(ref_bf16),
                               rtol=5e-4, atol=5e-4)

    print("KERNEL_OK")
</pallas_src>

<mosaic_0001>
module attributes {stable_mosaic.version = 11 : i64} {
  func.func @fm_kernel(%arg0: i32, %arg1: memref<4x128xi32, #tpu.memory_space<vmem>>, %arg2: memref<10x48xf32, #tpu.memory_space<vmem>>, %arg3: memref<1x48xf32, #tpu.memory_space<vmem>>, %arg4: memref<1x128xf32, #tpu.memory_space<vmem>>) attributes {dimension_semantics = [#tpu.dimension_semantics<parallel>], iteration_bounds = array<i64: 1>, scalar_prefetch = 0 : i64, scratch_operands = 0 : i64, tpu.core_type = #tpu.core_type<tc>, window_params = [{transform_indices = @transform_0, window_bounds = array<i64: 4, 128>}, {pipeline_mode = #tpu.pipeline_mode<synchronous>, transform_indices = @transform_1, window_bounds = array<i64: 10, 48>}, {pipeline_mode = #tpu.pipeline_mode<synchronous>, transform_indices = @transform_2, window_bounds = array<i64: 1, 48>}, {transform_indices = @transform_3, window_bounds = array<i64: 1, 128>}]} {
    %c0 = arith.constant 0 : index
    %c0_0 = arith.constant 0 : index
    %0 = vector.load %arg1[%c0, %c0_0] : memref<4x128xi32, #tpu.memory_space<vmem>>, vector<4x128xi32>
    %1 = tpu.iota {dimensions = array<i32: 0>} : vector<8x128xi32>
    %2 = vector.extract_strided_slice %0 {offsets = [0, 0], sizes = [1, 128], strides = [1, 1]} : vector<4x128xi32> to vector<1x128xi32>
    %3 = vector.broadcast %2 : vector<1x128xi32> to vector<8x128xi32>
    %4 = arith.cmpi eq, %3, %1 : vector<8x128xi32>
    %5 = arith.extui %4 : vector<8x128xi1> to vector<8x128xi32>
    %6 = arith.sitofp %5 : vector<8x128xi32> to vector<8x128xf32>
    %7 = tpu.iota {dimensions = array<i32: 0>} : vector<16x128xi32>
    %8 = vector.extract_strided_slice %0 {offsets = [1, 0], sizes = [1, 128], strides = [1, 1]} : vector<4x128xi32> to vector<1x128xi32>
    %9 = vector.broadcast %8 : vector<1x128xi32> to vector<16x128xi32>
    %10 = arith.cmpi eq, %9, %7 : vector<16x128xi32>
    %11 = arith.extui %10 : vector<16x128xi1> to vector<16x128xi32>
    %12 = arith.sitofp %11 : vector<16x128xi32> to vector<16x128xf32>
    %13 = tpu.iota {dimensions = array<i32: 0>} : vector<8x128xi32>
    %14 = vector.extract_strided_slice %0 {offsets = [2, 0], sizes = [1, 128], strides = [1, 1]} : vector<4x128xi32> to vector<1x128xi32>
    %15 = vector.broadcast %14 : vector<1x128xi32> to vector<8x128xi32>
    %16 = arith.cmpi eq, %15, %13 : vector<8x128xi32>
    %17 = arith.extui %16 : vector<8x128xi1> to vector<8x128xi32>
    %18 = arith.sitofp %17 : vector<8x128xi32> to vector<8x128xf32>
    %19 = tpu.iota {dimensions = array<i32: 0>} : vector<16x128xi32>
    %20 = vector.extract_strided_slice %0 {offsets = [3, 0], sizes = [1, 128], strides = [1, 1]} : vector<4x128xi32> to vector<1x128xi32>
    %21 = vector.broadcast %20 : vector<1x128xi32> to vector<16x128xi32>
    %22 = arith.cmpi eq, %21, %19 : vector<16x128xi32>
    %23 = arith.extui %22 : vector<16x128xi1> to vector<16x128xi32>
    %24 = arith.sitofp %23 : vector<16x128xi32> to vector<16x128xf32>
    %25 = tpu.concatenate %6, %12, %18, %24 in 0 : vector<8x128xf32>, vector<16x128xf32>, vector<8x128xf32>, vector<16x128xf32> -> vector<48x128xf32>
    %c0_1 = arith.constant 0 : index
    %c0_2 = arith.constant 0 : index
    %26 = vector.load %arg2[%c0_1, %c0_2] : memref<10x48xf32, #tpu.memory_space<vmem>>, vector<10x48xf32>
    %cst = arith.constant dense<0.000000e+00> : vector<10x128xf32>
    %27 = tpu.matmul %26, %25, %cst {dimension_numbers = #tpu.dot_dimension_numbers<[1], [0], [0], [1], [0, 0, 1, 1], [], []>} : vector<10x48xf32>, vector<48x128xf32>, vector<10x128xf32> -> vector<10x128xf32>
    %c0_3 = arith.constant 0 : index
    %c0_4 = arith.constant 0 : index
    %28 = vector.load %arg3[%c0_3, %c0_4] : memref<1x48xf32, #tpu.memory_space<vmem>>, vector<1x48xf32>
    %cst_5 = arith.constant dense<0.000000e+00> : vector<1x128xf32>
    %29 = tpu.matmul %28, %25, %cst_5 {dimension_numbers = #tpu.dot_dimension_numbers<[1], [0], [0], [1], [0, 0, 1, 1], [], []>} : vector<1x48xf32>, vector<48x128xf32>, vector<1x128xf32> -> vector<1x128xf32>
    %30 = arith.mulf %27, %27 : vector<10x128xf32>
    %cst_6 = arith.constant dense<0.000000e+00> : vector<128xf32>
    %31 = vector.multi_reduction <add>, %30, %cst_6 [0] : vector<10x128xf32> to vector<128xf32>
    %32 = vector.shape_cast %31 : vector<128xf32> to vector<1x128xf32>
    %cst_7 = arith.constant 5.000000e-01 : f32
    %33 = vector.broadcast %cst_7 : f32 to vector<1x128xf32>
    %34 = arith.mulf %33, %32 : vector<1x128xf32>
    %35 = arith.addf %29, %34 : vector<1x128xf32>
    %36 = arith.negf %35 : vector<1x128xf32>
    %37 = math.exp %36 : vector<1x128xf32>
    %cst_8 = arith.constant 1.000000e+00 : f32
    %38 = vector.broadcast %cst_8 : f32 to vector<1x128xf32>
    %39 = arith.addf %38, %37 : vector<1x128xf32>
    %40 = arith.divf %38, %39 : vector<1x128xf32>
    %c0_9 = arith.constant 0 : index
    %c0_10 = arith.constant 0 : index
    %41 = vector.load %arg4[%c0_9, %c0_10] : memref<1x128xf32, #tpu.memory_space<vmem>>, vector<1x128xf32>
    tpu.vector_store %arg4[%c0_9, %c0_10], %40 {strides = array<i32>} : memref<1x128xf32, #tpu.memory_space<vmem>>, vector<1x128xf32>,
    return
  }
  func.func @transform_0(%arg0: i32) -> (i32, i32) {
    %c0_i32 = arith.constant 0 : i32
    %c0_i32_0 = arith.constant 0 : i32
    return %c0_i32, %arg0 : i32, i32
  }
  func.func @transform_1(%arg0: i32) -> (i32, i32) {
    %c0_i32 = arith.constant 0 : i32
    %c0_i32_0 = arith.constant 0 : i32
    %c0_i32_1 = arith.constant 0 : i32
    return %c0_i32, %c0_i32_0 : i32, i32
  }
  func.func @transform_2(%arg0: i32) -> (i32, i32) {
    %c0_i32 = arith.constant 0 : i32
    %c0_i32_0 = arith.constant 0 : i32
    %c0_i32_1 = arith.constant 0 : i32
    return %c0_i32, %c0_i32_0 : i32, i32
  }
  func.func @transform_3(%arg0: i32) -> (i32, i32) {
    %c0_i32 = arith.constant 0 : i32
    %c0_i32_0 = arith.constant 0 : i32
    return %c0_i32, %arg0 : i32, i32
  }
}

</mosaic_0001>

<llo_original>
// kernel: tpu_custom_call.1
$region0: #{tpu_custom_call.1}
  #allocation0 [shape = 'u32[]', space=smem, size = 0x4, offset = 0x4, fixed_abs, tag = 'smem constant byte address 0x4 - core index']
  #allocation1 [shape = 'u32[72,128]{1,0:T(1,128)}', space=vmem, size = 0x9000, scoped, tag = 'internal scratch']
  %s0 = inlined_call_operand.hbm [shape: s32[4,128], index: 0, kind: input, shape index: {}]
  %s1 = inlined_call_operand.hbm [shape: f32[10,48], index: 1, kind: input, shape index: {}]
  %s2 = inlined_call_operand.vmem [shape: f32[1,48], index: 2, kind: input, shape index: {}]
  %s3 = inlined_call_operand.hbm [shape: f32[1,128], index: 3, kind: output, shape index: {}]
  %s4 = sld [smem:[#allocation0]]
  $region30: #{tpu_custom_call.1} parent=0
    _
  %s6 = ssub.s32 1, %s4
  %s7 = scalar_select 0, %s6, %s4
  $region1: #{tpu_custom_call.1} parent=0
    #allocation2 [shape = 'u8[2048]{0}', space=vmem, size = 0x800, scoped, tag = 'input window, operand 0, single buffered']
    #allocation3 [shape = 's32[1]{0}', space=sflag, size = 0x4, scoped, tag = 'scoped memory for tpu_custom_call.1']
    #allocation4 [shape = 's32[1]{0}', space=sflag, size = 0x4, scoped, tag = 'scoped memory for tpu_custom_call.1']
    #allocation5 [shape = 'u8[8192]{0}', space=vmem, size = 0x2000, scoped, tag = 'input window, operand 1, single buffered']
    #allocation6 [shape = 's32[1]{0}', space=sflag, size = 0x4, scoped, tag = 'scoped memory for tpu_custom_call.1']
    #allocation7 [shape = 'u8[512]{0}', space=vmem, size = 0x400, scoped, tag = 'output window, operand 0, single buffered']
    %8 = vsyncpa [#allocation3], 0
    %9 = vsyncpa [#allocation6], 0
    %10 = vsyncpa [#allocation4], 0
    // Predicated region
    $region2: #{tpu_custom_call.1} parent=1 // pred_check
      _
    $region3: #{tpu_custom_call.1} parent=1 // pred_check_branch
      %12 = sbr.rel (0) target = $region5
    $region4: #{tpu_custom_call.1} parent=1 // pred_region
      %14 = vsyncadd [#allocation3], 0
      %s16 = sshll.u32 %s0, 4
      %s17 = int_to_ptr.hbm [resolvable:$true] %s16
      %s18 = sshll.u32 [#allocation2], 4
      %s19 = int_to_ptr.vmem [resolvable:$true] %s18
      %21 = dma.hbm_to_vmem [thread:$0]  %s17, 64, %s19, [#allocation3]
    $region5: #{tpu_custom_call.1} parent=1 // pred_fallthru
      _
    // Predicated region
    $region6: #{tpu_custom_call.1} parent=1 // pred_check
      _
    $region7: #{tpu_custom_call.1} parent=1 // pred_check_branch
      %23 = sbr.rel (0) target = $region9
    $region8: #{tpu_custom_call.1} parent=1 // pred_region
      %25 = vsyncadd [#allocation6], 0
      %s26 = sshll.u32 %s1, 4
      %s27 = int_to_ptr.hbm [resolvable:$true] %s26
      %s28 = sshll.u32 [#allocation5], 4
      %s29 = int_to_ptr.vmem [resolvable:$true] %s28
      %34 = dma.hbm_to_vmem [thread:$0]  %s27, 256, %s29, [#allocation6], 128, 128, 8
    $region9: #{tpu_custom_call.1} parent=1 // pred_fallthru
      _
    // Predicated region
    $region10: #{tpu_custom_call.1} parent=1 // pred_check
      _
    $region11: #{tpu_custom_call.1} parent=1 // pred_check_branch
      %36 = sbr.rel (0) target = $region13
    $region12: #{tpu_custom_call.1} parent=1 // pred_region
      _
    $region13: #{tpu_custom_call.1} parent=1 // pred_fallthru
      _
    // Predicated region
    $region14: #{tpu_custom_call.1} parent=1 // pred_check
      _
    $region15: #{tpu_custom_call.1} parent=1 // pred_check_branch
      %38 = sbr.rel (0) target = $region17
    $region16: #{tpu_custom_call.1} parent=1 // pred_region
      %40 = dma.done [#allocation3], 64
    $region17: #{tpu_custom_call.1} parent=1 // pred_fallthru
      _
    // Predicated region
    $region18: #{tpu_custom_call.1} parent=1 // pred_check
      _
    $region19: #{tpu_custom_call.1} parent=1 // pred_check_branch
      %42 = sbr.rel (0) target = $region21
    $region20: #{tpu_custom_call.1} parent=1 // pred_region
      %44 = dma.done [#allocation6], 256
    $region21: #{tpu_custom_call.1} parent=1 // pred_fallthru
      _
    %v45 = vld [vmem:[#allocation2] sm:$0xf]
    %v46 = vlaneseq
    %v47 = vshrl.u32 %v46, 7
    %v48 = vperm.slane %v45, 0
    %vm49 = vcmp.eq.s32.totalorder %v48, %v47
    %v50 = vsel %vm49, 1, 0
    %v51 = vcvt.s32.f32 %v50
    %v52 = vadd.s32 %v47, 8
    %v53 = vperm.slane %v45, 1
    %vm54 = vcmp.eq.s32.totalorder %v53, %v47
    %vm55 = vcmp.eq.s32.totalorder %v53, %v52
    %v56 = vsel %vm54, 1, 0
    %v57 = vsel %vm55, 1, 0
    %v58 = vcvt.s32.f32 %v56
    %v59 = vcvt.s32.f32 %v57
    %v60 = vperm.slane %v45, 2
    %vm61 = vcmp.eq.s32.totalorder %v60, %v47
    %v62 = vsel %vm61, 1, 0
    %v63 = vcvt.s32.f32 %v62
    %v64 = vperm.slane %v45, 3
    %vm65 = vcmp.eq.s32.totalorder %v64, %v47
    %vm66 = vcmp.eq.s32.totalorder %v64, %v52
    %v67 = vsel %vm65, 1, 0
    %v68 = vsel %vm66, 1, 0
    %v69 = vcvt.s32.f32 %v67
    %v70 = vcvt.s32.f32 %v68
    %v71 = vld [vmem:[#allocation5] sm:$0xff]
    %v72 = vld [vmem:[#allocation5 + $0x8] sm:$0x3]
    %vm73 = vcmask 392192
    %v75 = vsel %vm73, %v71, 0
    %v78 = vsel %vm73, %v72, 0
    %80 = vmatpush.msra.mxu0 0.0
    %81 = vmatpush.msra.mxu0 0.0
    %82 = vmatpush.msra.mxu0 0.0
    %83 = vmatpush.msra.mxu0 0.0
    %84 = vmatpush.msra.mxu0 0.0
    %85 = vmatpush.msra.mxu0 0.0
    %86 = vmatpush.msra.mxu0 0.0
    %87 = vmatpush.msra.mxu0 0.0
    %88 = vmatpush.msra.mxu0 0.0
    %89 = vmatpush.msra.mxu0 0.0
    %90 = vmatpush.msra.mxu0 %v70
    %91 = vmatpush.msra.mxu0 %v69
    %92 = vmatpush.msra.mxu0 %v63
    %93 = vmatpush.msra.mxu0 %v59
    %94 = vmatpush.msra.mxu0 %v58
    %95 = vmatpush.msra.mxu0 %v51
    %96 = vmatmul.f32.gmra.mxu0 %v75
    %v97 = vpop.f32.mrf.mxu0
    %v98 = vadd.f32 0.0, %v97
    %99 = vmatmul.f32.gmra.mxu0 %v78
    %v100 = vpop.f32.mrf.mxu0
    %v101 = vadd.f32 0.0, %v100
    %102 = vdwg.mxu0
    %v103 = vld [vmem:[%s2] sm:$0x1]
    %v104 = vmul.f32 %v98, %v98
    %v105 = vmul.f32 %v101, %v101
    %vm106 = vcmask 1041408
    %v107 = vsel %vm106, %v105, 0.0
    %v108 = vadd.f32 %v104, %v107
    %v109 = vrot.slane %v108, 4
    %v110 = vadd.f32 %v108, %v109
    %v111 = vrot.slane %v110, 2
    %v112 = vadd.f32 %v110, %v111
    %v113 = vrot.slane %v112, 1
    %v114 = vadd.f32 %v112, %v113
    %v115 = vmul.f32 %v114, 0.5
    %v117 = vsel %vm73, %v103, 0
    %119 = vmatpush.msra.mxu0 0.0
    %120 = vmatpush.msra.mxu0 0.0
    %121 = vmatpush.msra.mxu0 0.0
    %122 = vmatpush.msra.mxu0 0.0
    %123 = vmatpush.msra.mxu0 0.0
    %124 = vmatpush.msra.mxu0 0.0
    %125 = vmatpush.msra.mxu0 0.0
    %126 = vmatpush.msra.mxu0 0.0
    %127 = vmatpush.msra.mxu0 0.0
    %128 = vmatpush.msra.mxu0 0.0
    %129 = vmatpush.msra.mxu0 %v70
    %130 = vmatpush.msra.mxu0 %v69
    %131 = vmatpush.msra.mxu0 %v63
    %132 = vmatpush.msra.mxu0 %v59
    %133 = vmatpush.msra.mxu0 %v58
    %134 = vmatpush.msra.mxu0 %v51
    %135 = vmatmul.f32.gmra.mxu0 %v117
    %v136 = vpop.f32.mrf.mxu0
    %v137 = vadd.f32 %v115, %v136
    %138 = vdwg.mxu0
    %v139 = vxor.u32 %v137, 2147483648
    %v140 = vmul.f32 %v139, 1.442695
    %v141 = vpow.pop %v140
    %v142 = vadd.f32 %v141, 1.0
    %v143 = vrcp.pop %v142
    %v144 = vmul.f32 %v142, %v143
    %v145 = vsub.f32 1.0, %v144
    %v146 = vmul.f32 %v143, %v145
    %v147 = vadd.f32 %v143, %v146
    %vm148 = vweird.f32 %v142
    %vm149 = vweird.f32 %v143
    %vm150 = vmor %vm148, %vm149
    %v151 = vsel %vm150, %v143, %v147
    %v152 = vand.u32 2147483647, %v142
    %vm153 = vcmp.eq.f32.partialorder %v152, 8.507059e+37
    %v154 = vand.u32 %v142, 2147483648
    %v155 = vor.u32 1.1754944e-38, %v154
    %v156 = vsel %vm153, %v155, %v151
    %v157 = vmul.f32 1.0, %v156
    %158 = vst [vmem:[#allocation7] sm:$0x1] %v157
    // Predicated region
    $region22: #{tpu_custom_call.1} parent=1 // pred_check
      _
    $region23: #{tpu_custom_call.1} parent=1 // pred_check_branch
      %160 = sbr.rel (0) target = $region25
    $region24: #{tpu_custom_call.1} parent=1 // pred_region
      %162 = vsyncadd [#allocation4], 0
      %s164 = sshll.u32 [#allocation7], 4
      %s165 = int_to_ptr.vmem [resolvable:$true] %s164
      %s166 = sshll.u32 %s3, 4
      %s167 = int_to_ptr.hbm [resolvable:$true] %s166
      %169 = dma.vmem_to_hbm [thread:$0]  %s165, 16, %s167, [#allocation4]
    $region25: #{tpu_custom_call.1} parent=1 // pred_fallthru
      _
    // Predicated region
    $region26: #{tpu_custom_call.1} parent=1 // pred_check
      _
    $region27: #{tpu_custom_call.1} parent=1 // pred_check_branch
      %171 = sbr.rel (0) target = $region29
    $region28: #{tpu_custom_call.1} parent=1 // pred_region
      %173 = dma.done [#allocation4], 16
    $region29: #{tpu_custom_call.1} parent=1 // pred_fallthru
      _
    %174 = vsyncpa [#allocation3], 1
    %175 = vsyncpa [#allocation6], 1
    %176 = vsyncpa [#allocation4], 1

</llo_original>
